<compile_context>
chip_gen: v6e
topology: v6e:2x2x1
jax: 0.10.0
libtpu: 0.0.40
codegen_flags: <defaults>
</compile_context>

<pallas_src>
import jax
import jax.numpy as jnp
from jax.experimental import pallas as pl
from jax.experimental.pallas import tpu as pltpu


# ---------------------------------------------------------------------------
# Kernel body: elementwise product on the current VMEM tile (pure VPU work).
# ---------------------------------------------------------------------------
def hadamard_kernel(a_ref, b_ref, o_ref):
    o_ref[...] = a_ref[...] * b_ref[...]


SMALL_LIMIT = 4 << 20   # per-operand bytes for the grid-less path
TILE_BYTES = 4 << 20    # per-operand per-tile byte budget on the tiled path


def _cost_estimate(num_elems, itemsize):
    # 1 multiply per element; 2 reads + 1 write of the whole operand size.
    return pl.CostEstimate(
        flops=num_elems,
        transcendentals=0,
        bytes_accessed=3 * num_elems * itemsize,
    )


def _single_block_product(x2, y2, cost):
    """Grid-less: whole operands live in VMEM, one DMA each, no pipeline steps."""
    return pl.pallas_call(
        hadamard_kernel,
        out_shape=jax.ShapeDtypeStruct(x2.shape, x2.dtype),
        in_specs=[
            pl.BlockSpec(memory_space=pltpu.MemorySpace.VMEM),
            pl.BlockSpec(memory_space=pltpu.MemorySpace.VMEM),
        ],
        out_specs=pl.BlockSpec(memory_space=pltpu.MemorySpace.VMEM),
        cost_estimate=cost,
    )(x2, y2)


def _tiled_product(x2, y2, tile_rows, width, cost):
    """Pipelined 2-D tiling over the row axis; lane-dense blocks (width>=128)."""
    rows = x2.shape[0]
    grid = (pl.cdiv(rows, tile_rows),)
    # On v7x split the (embarrassingly parallel) grid across the two
    # TensorCores; on single-TC chips this is a no-op.
    core_parallel = getattr(pltpu, "CORE_PARALLEL", "parallel")
    return pl.pallas_call(
        hadamard_kernel,
        out_shape=jax.ShapeDtypeStruct((rows, width), x2.dtype),
        grid=grid,
        in_specs=[
            pl.BlockSpec((tile_rows, width), lambda i: (i, 0)),
            pl.BlockSpec((tile_rows, width), lambda i: (i, 0)),
        ],
        out_specs=pl.BlockSpec((tile_rows, width), lambda i: (i, 0)),
        compiler_params=pltpu.CompilerParams(
            dimension_semantics=(core_parallel,),
            # 3 operands x 2 pipeline buffers x 4 MiB tiles = 24 MiB + headroom.
            vmem_limit_bytes=48 << 20,
        ),
        cost_estimate=cost,
    )(x2, y2)


def hadamard_product(x, y):
    """Elementwise (Hadamard) product of two same-shape arrays via Pallas."""
    assert x.shape == y.shape, "HadamardProduct requires matching shapes"
    assert x.dtype == y.dtype, "HadamardProduct requires matching dtypes"

    orig_shape = x.shape
    n = x.size
    itemsize = jnp.dtype(x.dtype).itemsize
    per_operand_bytes = n * itemsize
    # Sub-32-bit dtypes pack along sublanes: 8 rows f32, 16 bf16, 32 i8/fp8.
    sublane_pack = max(8, 32 // itemsize)
    cost = _cost_estimate(n, itemsize)

    # ---------------- small path: single grid-less VMEM block ----------------
    if per_operand_bytes <= SMALL_LIMIT:
        if n % 128 == 0:
            # Lane-dense 2-D view (contiguous reshape -> no HBM copy).
            x2 = x.reshape(n // 128, 128)
            y2 = y.reshape(n // 128, 128)
        else:
            # Full-array block spec => no (8,128) constraint; Pallas handles it.
            x2, y2 = x, y
        out = _single_block_product(x2, y2, cost)
        return out.reshape(orig_shape)

    # ---------------- large path: pipelined lane-dense tiling ----------------
    if n % 128 == 0:
        width = 1024 if n % 1024 == 0 else 128
        rows = n // width
        # dtype-aware rows so per-step DMA bytes stay ~TILE_BYTES per operand.
        tile_rows = max(
            sublane_pack,
            (TILE_BYTES // (width * itemsize)) // sublane_pack * sublane_pack,
        )
        tile_rows = min(tile_rows, rows)
        x2 = x.reshape(rows, width)
        y2 = y.reshape(rows, width)
        out = _tiled_product(x2, y2, tile_rows, width, cost)
        return out.reshape(orig_shape)

    # Rare corner: large AND element count not divisible by 128.  Run the
    # 128-aligned prefix through the tiled kernel and the (<128-element) tail
    # through a tiny grid-less call, then stitch.  This avoids padded copies
    # of both inputs at the cost of one extra output pass for the concatenate.
    xf = x.reshape(-1)
    yf = y.reshape(-1)
    n_main = (n // 128) * 128
    width = 1024 if n_main % 1024 == 0 else 128
    rows = n_main // width
    tile_rows = max(
        sublane_pack,
        (TILE_BYTES // (width * itemsize)) // sublane_pack * sublane_pack,
    )
    tile_rows = min(tile_rows, rows)
    main_out = _tiled_product(
        xf[:n_main].reshape(rows, width),
        yf[:n_main].reshape(rows, width),
        tile_rows, width,
        _cost_estimate(n_main, itemsize),
    ).reshape(-1)
    tail_len = n - n_main
    tail_out = _single_block_product(
        xf[n_main:].reshape(1, tail_len),
        yf[n_main:].reshape(1, tail_len),
        _cost_estimate(tail_len, itemsize),
    ).reshape(-1)
    return jnp.concatenate([main_out, tail_out]).reshape(orig_shape)


if __name__ == "__main__":
    key = jax.random.PRNGKey(0)
    k1, k2 = jax.random.split(key)

    # NCHW-shaped example inputs consistent with the module's forward.
    shape = (2, 4, 16, 16)
    input1 = jax.random.normal(k1, shape, dtype=jnp.float32)
    input2 = jax.random.normal(k2, shape, dtype=jnp.float32)

    fn = jax.jit(hadamard_product)
    out = jax.block_until_ready(fn(input1, input2))

    # Correctness check against plain JAX reference.
    ref = input1 * input2
    assert out.shape == shape
    assert jnp.allclose(out, ref, atol=1e-6, rtol=1e-6)

    print("KERNEL_OK")
</pallas_src>

<mosaic_0001>
module attributes {stable_mosaic.version = 11 : i64} {
  func.func @hadamard_kernel(%arg0: memref<16x128xf32, #tpu.memory_space<vmem>>, %arg1: memref<16x128xf32, #tpu.memory_space<vmem>>, %arg2: memref<16x128xf32, #tpu.memory_space<vmem>>) attributes {dimension_semantics = [], scalar_prefetch = 0 : i64, scratch_operands = 0 : i64, tpu.core_type = #tpu.core_type<tc>} {
    %c0 = arith.constant 0 : index
    %c0_0 = arith.constant 0 : index
    %0 = vector.load %arg0[%c0, %c0_0] : memref<16x128xf32, #tpu.memory_space<vmem>>, vector<16x128xf32>
    %c0_1 = arith.constant 0 : index
    %c0_2 = arith.constant 0 : index
    %1 = vector.load %arg1[%c0_1, %c0_2] : memref<16x128xf32, #tpu.memory_space<vmem>>, vector<16x128xf32>
    %2 = arith.mulf %0, %1 : vector<16x128xf32>
    %c0_3 = arith.constant 0 : index
    %c0_4 = arith.constant 0 : index
    %3 = vector.load %arg2[%c0_3, %c0_4] : memref<16x128xf32, #tpu.memory_space<vmem>>, vector<16x128xf32>
    tpu.vector_store %arg2[%c0_3, %c0_4], %2 {strides = array<i32>} : memref<16x128xf32, #tpu.memory_space<vmem>>, vector<16x128xf32>,
    return
  }
}

</mosaic_0001>

<llo_original>
// kernel: hadamard_product.1
$region0: #{hadamard_product.1}
  #allocation0 [shape = 'u32[]', space=smem, size = 0x4, offset = 0x4, fixed_abs, tag = 'smem constant byte address 0x4 - core index']
  #allocation1 [shape = 'u32[144,128]{1,0:T(1,128)}', space=vmem, size = 0x12000, scoped, tag = 'internal scratch']
  %s0 = inlined_call_operand.vmem [shape: f32[16,128], index: 0, kind: input, shape index: {}]
  %s1 = inlined_call_operand.vmem [shape: f32[16,128], index: 1, kind: input, shape index: {}]
  %s2 = inlined_call_operand.vmem [shape: f32[16,128], index: 2, kind: output, shape index: {}]
  %s3 = sld [smem:[#allocation0]]
  $region18: #{hadamard_product.1} parent=0
    _
  %s5 = ssub.s32 1, %s3
  %s6 = scalar_select 0, %s5, %s3
  // Predicated region
  $region2: #{hadamard_product.1} parent=0 // pred_check
    _
  $region3: #{hadamard_product.1} parent=0 // pred_check_branch
    %8 = sbr.rel (0) target = $region5
  $region4: #{hadamard_product.1} parent=0 // pred_region
    _
  $region5: #{hadamard_product.1} parent=0 // pred_fallthru
    _
  // Predicated region
  $region6: #{hadamard_product.1} parent=0 // pred_check
    _
  $region7: #{hadamard_product.1} parent=0 // pred_check_branch
    %10 = sbr.rel (0) target = $region9
  $region8: #{hadamard_product.1} parent=0 // pred_region
    _
  $region9: #{hadamard_product.1} parent=0 // pred_fallthru
    _
  %v11 = vld [vmem:[%s0] sm:$0xff]
  %v12 = vld [vmem:[%s0 + $0x8] sm:$0xff]
  %v13 = vld [vmem:[%s1] sm:$0xff]
  %v14 = vld [vmem:[%s1 + $0x8] sm:$0xff]
  %v15 = vmul.f32 %v11, %v13
  %v16 = vmul.f32 %v12, %v14
  %17 = vst [vmem:[%s2] sm:$0xff] %v15
  %18 = vst [vmem:[%s2 + $0x8] sm:$0xff] %v16
  // Predicated region
  $region10: #{hadamard_product.1} parent=0 // pred_check
    _
  $region11: #{hadamard_product.1} parent=0 // pred_check_branch
    %20 = sbr.rel (0) target = $region13
  $region12: #{hadamard_product.1} parent=0 // pred_region
    _
  $region13: #{hadamard_product.1} parent=0 // pred_fallthru
    _
  // Predicated region
  $region14: #{hadamard_product.1} parent=0 // pred_check
    _
  $region15: #{hadamard_product.1} parent=0 // pred_check_branch
    %22 = sbr.rel (0) target = $region17
  $region16: #{hadamard_product.1} parent=0 // pred_region
    _
  $region17: #{hadamard_product.1} parent=0 // pred_fallthru
    _

</llo_original>
